<compile_context>
chip_gen: v7x
topology: tpu7x:2x2x1
jax: 0.10.0
libtpu: 0.0.40
codegen_flags: <defaults>
</compile_context>

<pallas_src>
import jax
import jax.numpy as jnp
from jax.experimental import pallas as pl
from jax.experimental.pallas import tpu as pltpu

_MIB = 1024 * 1024


def _group_dropout_kernel(scale_ref, x_ref, o_ref):
    """One program = (tm, tl) tile of flattened (batch*group, L) slabs.

    scale_ref: VMEM (tm, 1) f32   -- 0.0 (drop) or 1/(1-p) (keep) per slab
    x_ref    : VMEM (tm, tl) x.dtype
    o_ref    : VMEM (tm, tl) x.dtype
    """
    # Lane-broadcast multiply on the VPU; f32 math, single rounding on store.
    o_ref[...] = (x_ref[...] * scale_ref[...]).astype(o_ref.dtype)


def _tpu_vmem_capacity_bytes():
    try:
        return int(pltpu.get_tpu_info().vmem_capacity_bytes)
    except Exception:
        return 128 * _MIB  # v5e/v6e-like default if the query is unavailable


def _generation_budgets():
    """(target_block_bytes, vmem_limit_bytes) tuned per TPU generation."""
    vmem = _tpu_vmem_capacity_bytes()
    if vmem <= 64 * _MIB:
        # v7x: 64 MiB physical per TC.  Larger blocks amortize the ~0.35us
        # per-step overhead at 3.2 TB/s; 2x(in)+2x(out)+scale stays < 40 MiB.
        return 6 * _MIB, 40 * _MIB
    # v5e / v6e: 128 MiB physical (16 / 32 MiB scoped default).
    return 4 * _MIB, 64 * _MIB


def _sublane_multiple(itemsize):
    # Sub-32-bit dtypes pack along sublanes: align row tiles to the packed-row
    # multiple (16 bf16/fp16, 32 int8/fp8) to avoid relayout.
    return max(8, 32 // max(1, itemsize))


def _choose_tiles(rows, lanes, itemsize, target_block_bytes, min_block_bytes):
    """Pick (tm, tl) for the flattened (rows, lanes) layout."""
    sub = _sublane_multiple(itemsize)
    scale_row_bytes = 128 * 4  # (tm, 1) f32 scale block pads to (tm, 128)

    # Lane tile: prefer full lanes; tile only if a minimal-row block overflows.
    if sub * lanes * itemsize + sub * scale_row_bytes <= target_block_bytes:
        tl = lanes
    else:
        tl = (target_block_bytes // (sub * itemsize)) // 128 * 128
        tl = int(max(128, min(tl, lanes)))

    # Row tile (scale padding counted against the budget).
    row_block_bytes = tl * itemsize + scale_row_bytes
    tm = int(max(sub, target_block_bytes // row_block_bytes))
    if tm >= rows:
        tm = rows  # block dim == full array dim: always legal
    else:
        tm = max(sub, (tm // sub) * sub)

    # Aim for >= 4 grid steps (2 per v7x core) so read/write DMAs of
    # neighbouring steps overlap, while keeping blocks >= min_block_bytes.
    def n_steps(tm_, tl_):
        return pl.cdiv(rows, tm_) * pl.cdiv(lanes, tl_)

    while n_steps(tm, tl) < 4:
        new_tm = (max(sub, tm // 2) // sub) * sub
        new_tl = (max(128, tl // 2) // 128) * 128
        if new_tm < tm and new_tm * (tl * itemsize + scale_row_bytes) >= min_block_bytes:
            tm = new_tm
        elif new_tl < tl and tm * (new_tl * itemsize + scale_row_bytes) >= min_block_bytes:
            tl = new_tl
        else:
            break
    return tm, tl


def group_dropout(x, key, *, p=0.5, group=16, training=True,
                  target_block_bytes=None, min_block_bytes=None):
    """Pallas implementation of GroupDropout.forward.

    x: (N, C) or (N, C, H, W), NCHW layout, C % group == 0.
    """
    if (not training) or p <= 1e-5:
        return x

    original_shape = x.shape
    if x.ndim == 2:
        n, c = x.shape
        h = w = 1
    else:
        n, c, h, w = x.shape
    assert c % group == 0, (
        f"Channels should be divided by group number [{group}]")

    if p >= 1.0:  # everything dropped; avoid 0 * inf = NaN
        return jnp.zeros_like(x)

    rows = n * group                  # one row per (n, group) slab
    lanes = (c // group) * h * w      # lane-dense flattened slab length

    # One Bernoulli(keep = 1 - p) draw per (n, group) slab == dropout2d on the
    # (N, group, C/G*H, W) view.  Scale stays f32; rounding happens once.
    keep = jax.random.bernoulli(key, 1.0 - p, (rows,))
    scale = jnp.where(keep, jnp.float32(1.0 / (1.0 - p)), jnp.float32(0.0))
    scale = scale.reshape(rows, 1)

    x2 = x.reshape(rows, lanes)

    if lanes < 128 or lanes % 128 != 0:
        # Narrow / misaligned slabs: a Pallas output block < 128 lanes lowers
        # to masked partial stores and pads every VMEM buffer to 128 lanes;
        # XLA's fused elementwise multiply is already at roofline here.
        out2 = (x2 * scale).astype(x.dtype)
        return out2.reshape(original_shape)

    auto_target, vmem_limit = _generation_budgets()
    if target_block_bytes is None:
        target_block_bytes = auto_target
    if min_block_bytes is None:
        min_block_bytes = min(1 * _MIB, target_block_bytes)

    itemsize = x2.dtype.itemsize
    tm, tl = _choose_tiles(rows, lanes, itemsize,
                           target_block_bytes, min_block_bytes)
    grid = (pl.cdiv(rows, tm), pl.cdiv(lanes, tl))

    cost = pl.CostEstimate(
        flops=rows * lanes,
        transcendentals=0,
        bytes_accessed=2 * rows * lanes * itemsize + rows * 4,
    )

    out2 = pl.pallas_call(
        _group_dropout_kernel,
        out_shape=jax.ShapeDtypeStruct((rows, lanes), x.dtype),
        grid=grid,
        in_specs=[
            pl.BlockSpec((tm, 1), lambda i, j: (i, 0)),    # per-slab scale
            pl.BlockSpec((tm, tl), lambda i, j: (i, j)),   # x slabs
        ],
        out_specs=pl.BlockSpec((tm, tl), lambda i, j: (i, j)),
        compiler_params=pltpu.CompilerParams(
            dimension_semantics=("parallel", "parallel"),
            vmem_limit_bytes=vmem_limit,
        ),
        cost_estimate=cost,
    )(scale, x2)

    return out2.reshape(original_shape)


def _reference(x, key, p, group):
    """Pure-JAX reference (same RNG draws as group_dropout)."""
    shp = x.shape
    if x.ndim == 2:
        n, c = shp
        h = w = 1
    else:
        n, c, h, w = shp
    rows = n * group
    lanes = (c // group) * h * w
    keep = jax.random.bernoulli(key, 1.0 - p, (rows,))
    scale = jnp.where(keep, jnp.float32(1.0 / (1.0 - p)), jnp.float32(0.0))
    out = (x.reshape(rows, lanes) * scale.reshape(rows, 1)).astype(x.dtype)
    return out.reshape(shp)


if __name__ == "__main__":
    key = jax.random.PRNGKey(0)
    k_d4, k_m4, k_d2, k_m2, k_dr, k_mr = jax.random.split(key, 6)
    P, GROUP = 0.5, 16

    # --- 4D NCHW case (lanes = 2*16*16 = 512, Pallas path) ---
    x4 = jax.random.normal(k_d4, (2, 32, 16, 16), dtype=jnp.float32)
    out4 = jax.block_until_ready(group_dropout(x4, k_m4, p=P, group=GROUP, training=True))
    assert jnp.allclose(out4, _reference(x4, k_m4, P, GROUP), atol=1e-6), "4D mismatch"

    # --- 2D case (lanes = 2 < 128 -> fused-jnp fallback path) ---
    x2 = jax.random.normal(k_d2, (2, 32), dtype=jnp.float32)
    out2 = jax.block_until_ready(group_dropout(x2, k_m2, p=P, group=GROUP, training=True))
    assert jnp.allclose(out2, _reference(x2, k_m2, P, GROUP), atol=1e-6), "2D mismatch"

    # --- Forced-small blocks: exercises lane tiling + ragged lane blocks ---
    xr = jax.random.normal(k_dr, (2, 160, 8, 8), dtype=jnp.float32)  # lanes = 640
    outr = jax.block_until_ready(group_dropout(
        xr, k_mr, p=P, group=GROUP, training=True,
        target_block_bytes=16 * 1024, min_block_bytes=8 * 1024))
    assert jnp.allclose(outr, _reference(xr, k_mr, P, GROUP), atol=1e-6), "ragged mismatch"

    # --- Eval mode is identity ---
    out_eval = group_dropout(x4, k_m4, p=P, group=GROUP, training=False)
    assert jnp.array_equal(out_eval, x4)

    print("KERNEL_OK")
</pallas_src>

<mosaic_0001>
module attributes {stable_mosaic.version = 11 : i64} {
  func.func @_group_dropout_kernel(%arg0: i32, %arg1: i32, %arg2: memref<32x1xf32, #tpu.memory_space<vmem>>, %arg3: memref<32x512xf32, #tpu.memory_space<vmem>>, %arg4: memref<32x512xf32, #tpu.memory_space<vmem>>) attributes {dimension_semantics = [#tpu.dimension_semantics<parallel>, #tpu.dimension_semantics<parallel>], iteration_bounds = array<i64: 1, 1>, scalar_prefetch = 0 : i64, scratch_operands = 0 : i64, tpu.core_type = #tpu.core_type<tc>, window_params = [{transform_indices = @transform_0, window_bounds = array<i64: 32, 1>}, {transform_indices = @transform_1, window_bounds = array<i64: 32, 512>}, {transform_indices = @transform_2, window_bounds = array<i64: 32, 512>}]} {
    %c0 = arith.constant 0 : index
    %c0_0 = arith.constant 0 : index
    %0 = vector.load %arg3[%c0, %c0_0] : memref<32x512xf32, #tpu.memory_space<vmem>>, vector<32x512xf32>
    %c0_1 = arith.constant 0 : index
    %c0_2 = arith.constant 0 : index
    %1 = vector.load %arg2[%c0_1, %c0_2] : memref<32x1xf32, #tpu.memory_space<vmem>>, vector<32x1xf32>
    %2 = vector.broadcast %1 : vector<32x1xf32> to vector<32x512xf32>
    %3 = arith.mulf %0, %2 : vector<32x512xf32>
    %c0_3 = arith.constant 0 : index
    %c0_4 = arith.constant 0 : index
    %4 = vector.load %arg4[%c0_3, %c0_4] : memref<32x512xf32, #tpu.memory_space<vmem>>, vector<32x512xf32>
    tpu.vector_store %arg4[%c0_3, %c0_4], %3 {strides = array<i32>} : memref<32x512xf32, #tpu.memory_space<vmem>>, vector<32x512xf32>,
    return
  }
  func.func @transform_0(%arg0: i32, %arg1: i32) -> (i32, i32) {
    %c0_i32 = arith.constant 0 : i32
    %c0_i32_0 = arith.constant 0 : i32
    return %arg0, %c0_i32 : i32, i32
  }
  func.func @transform_1(%arg0: i32, %arg1: i32) -> (i32, i32) {
    %c0_i32 = arith.constant 0 : i32
    return %arg0, %arg1 : i32, i32
  }
  func.func @transform_2(%arg0: i32, %arg1: i32) -> (i32, i32) {
    %c0_i32 = arith.constant 0 : i32
    return %arg0, %arg1 : i32, i32
  }
}

</mosaic_0001>

<llo_original>
// kernel: tpu_custom_call.1
$region0: #{tpu_custom_call.1}
  #allocation0 [shape = 'u32[]', space=smem, size = 0x4, offset = 0x4, fixed_abs, tag = 'smem constant byte address 0x4 - core index']
  #allocation1 [shape = 'u32[144,128]{1,0:T(1,128)}', space=vmem, size = 0x12000, scoped, tag = 'internal scratch']
  %s0 = inlined_call_operand.hbm [shape: f32[32,1], index: 0, kind: input, shape index: {}]
  %s1 = inlined_call_operand.hbm [shape: f32[32,512], index: 1, kind: input, shape index: {}]
  %s2 = inlined_call_operand.hbm [shape: f32[32,512], index: 2, kind: output, shape index: {}]
  %s3 = sld [smem:[#allocation0]]
  $region26: #{tpu_custom_call.1} parent=0
    _
  %s5 = ssub.s32 1, %s3
  %s6 = scalar_select 0, %s5, %s3
  $region1: #{tpu_custom_call.1} parent=0
    #allocation2 [shape = 'u8[16384]{0}', space=vmem, size = 0x4000, scoped, tag = 'input window, operand 0, single buffered']
    #allocation3 [shape = 's32[1]{0}', space=sflag, size = 0x4, scoped, tag = 'scoped memory for tpu_custom_call.1']
    #allocation4 [shape = 's32[1]{0}', space=sflag, size = 0x4, scoped, tag = 'scoped memory for tpu_custom_call.1']
    #allocation5 [shape = 'u8[65536]{0}', space=vmem, size = 0x10000, scoped, tag = 'input window, operand 1, single buffered']
    #allocation6 [shape = 's32[1]{0}', space=sflag, size = 0x4, scoped, tag = 'scoped memory for tpu_custom_call.1']
    #allocation7 [shape = 'u8[65536]{0}', space=vmem, size = 0x10000, scoped, tag = 'output window, operand 0, single buffered']
    %7 = vsyncpa [#allocation3], 0
    %8 = vsyncpa [#allocation6], 0
    %9 = vsyncpa [#allocation4], 0
    // Predicated region
    $region2: #{tpu_custom_call.1} parent=1 // pred_check
      _
    $region3: #{tpu_custom_call.1} parent=1 // pred_check_branch
      %11 = sbr.rel (0) target = $region5
    $region4: #{tpu_custom_call.1} parent=1 // pred_region
      %s13 = ssub.s32 512, 512
      %14 = vsyncadd [#allocation3], %s13
      %s15 = sshll.u32 [#allocation2], 4
      %s16 = int_to_ptr.vmem [resolvable:$true] %s15
      %21 = dma.hbm_to_vmem [thread:$0]  %s0, 512, %s16, [#allocation3], 128, 128, 8
    $region5: #{tpu_custom_call.1} parent=1 // pred_fallthru
      _
    // Predicated region
    $region6: #{tpu_custom_call.1} parent=1 // pred_check
      _
    $region7: #{tpu_custom_call.1} parent=1 // pred_check_branch
      %23 = sbr.rel (0) target = $region9
    $region8: #{tpu_custom_call.1} parent=1 // pred_region
      %s25 = ssub.s32 2048, 2048
      %26 = vsyncadd [#allocation6], %s25
      %s27 = sshll.u32 [#allocation5], 4
      %s28 = int_to_ptr.vmem [resolvable:$true] %s27
      %33 = dma.hbm_to_vmem [thread:$0]  %s1, 2048, %s28, [#allocation6], 512, 512, 32
    $region9: #{tpu_custom_call.1} parent=1 // pred_fallthru
      _
    // Predicated region
    $region10: #{tpu_custom_call.1} parent=1 // pred_check
      _
    $region11: #{tpu_custom_call.1} parent=1 // pred_check_branch
      %35 = sbr.rel (0) target = $region13
    $region12: #{tpu_custom_call.1} parent=1 // pred_region
      %36 = dma.done [#allocation3], 512
    $region13: #{tpu_custom_call.1} parent=1 // pred_fallthru
      _
    // Predicated region
    $region14: #{tpu_custom_call.1} parent=1 // pred_check
      _
    $region15: #{tpu_custom_call.1} parent=1 // pred_check_branch
      %38 = sbr.rel (0) target = $region17
    $region16: #{tpu_custom_call.1} parent=1 // pred_region
      %39 = dma.done [#allocation6], 2048
    $region17: #{tpu_custom_call.1} parent=1 // pred_fallthru
      _
    %v40 = vld [vmem:[#allocation5] sm:$0xff]
    %v41 = vld [vmem:[#allocation5 + $0x8] sm:$0xff]
    %v42 = vld [vmem:[#allocation5 + $0x10] sm:$0xff]
    %v43 = vld [vmem:[#allocation5 + $0x18] sm:$0xff]
    %v44 = vld [vmem:[#allocation5 + $0x20] sm:$0xff]
    %v45 = vld [vmem:[#allocation5 + $0x28] sm:$0xff]
    %v46 = vld [vmem:[#allocation5 + $0x30] sm:$0xff]
    %v47 = vld [vmem:[#allocation5 + $0x38] sm:$0xff]
    %v48 = vld [vmem:[#allocation5 + $0x40] sm:$0xff]
    %v49 = vld [vmem:[#allocation5 + $0x48] sm:$0xff]
    %v50 = vld [vmem:[#allocation5 + $0x50] sm:$0xff]
    %v51 = vld [vmem:[#allocation5 + $0x58] sm:$0xff]
    %v52 = vld [vmem:[#allocation5 + $0x60] sm:$0xff]
    %v53 = vld [vmem:[#allocation5 + $0x68] sm:$0xff]
    %v54 = vld [vmem:[#allocation5 + $0x70] sm:$0xff]
    %v55 = vld [vmem:[#allocation5 + $0x78] sm:$0xff]
    %v56 = vld [vmem:[#allocation2] sm:$0xff]
    %v57 = vld [vmem:[#allocation2 + $0x8] sm:$0xff]
    %v58 = vld [vmem:[#allocation2 + $0x10] sm:$0xff]
    %v59 = vld [vmem:[#allocation2 + $0x18] sm:$0xff]
    %61 = vset.pattern.permute.xlu0 0
    %62 = vperm.xlu0 %61, %v56
    %v63 = vpop.permute.xlu0 %62
    %66 = vset.pattern.permute.xlu0 0
    %67 = vperm.xlu0 %66, %v57
    %v68 = vpop.permute.xlu0 %67
    %71 = vset.pattern.permute.xlu0 0
    %72 = vperm.xlu0 %71, %v58
    %v73 = vpop.permute.xlu0 %72
    %76 = vset.pattern.permute.xlu0 0
    %77 = vperm.xlu0 %76, %v59
    %v78 = vpop.permute.xlu0 %77
    %v80 = vmul.f32 %v40, %v63
    %v81 = vmul.f32 %v41, %v63
    %v82 = vmul.f32 %v42, %v63
    %v83 = vmul.f32 %v43, %v63
    %v84 = vmul.f32 %v44, %v68
    %v85 = vmul.f32 %v45, %v68
    %v86 = vmul.f32 %v46, %v68
    %v87 = vmul.f32 %v47, %v68
    %v88 = vmul.f32 %v48, %v73
    %v89 = vmul.f32 %v49, %v73
    %v90 = vmul.f32 %v50, %v73
    %v91 = vmul.f32 %v51, %v73
    %v92 = vmul.f32 %v52, %v78
    %v93 = vmul.f32 %v53, %v78
    %v94 = vmul.f32 %v54, %v78
    %v95 = vmul.f32 %v55, %v78
    %96 = vst [vmem:[#allocation7] sm:$0xff] %v80
    %97 = vst [vmem:[#allocation7 + $0x8] sm:$0xff] %v81
    %98 = vst [vmem:[#allocation7 + $0x10] sm:$0xff] %v82
    %99 = vst [vmem:[#allocation7 + $0x18] sm:$0xff] %v83
    %100 = vst [vmem:[#allocation7 + $0x20] sm:$0xff] %v84
    %101 = vst [vmem:[#allocation7 + $0x28] sm:$0xff] %v85
    %102 = vst [vmem:[#allocation7 + $0x30] sm:$0xff] %v86
    %103 = vst [vmem:[#allocation7 + $0x38] sm:$0xff] %v87
    %104 = vst [vmem:[#allocation7 + $0x40] sm:$0xff] %v88
    %105 = vst [vmem:[#allocation7 + $0x48] sm:$0xff] %v89
    %106 = vst [vmem:[#allocation7 + $0x50] sm:$0xff] %v90
    %107 = vst [vmem:[#allocation7 + $0x58] sm:$0xff] %v91
    %108 = vst [vmem:[#allocation7 + $0x60] sm:$0xff] %v92
    %109 = vst [vmem:[#allocation7 + $0x68] sm:$0xff] %v93
    %110 = vst [vmem:[#allocation7 + $0x70] sm:$0xff] %v94
    %111 = vst [vmem:[#allocation7 + $0x78] sm:$0xff] %v95
    // Predicated region
    $region18: #{tpu_custom_call.1} parent=1 // pred_check
      _
    $region19: #{tpu_custom_call.1} parent=1 // pred_check_branch
      %113 = sbr.rel (0) target = $region21
    $region20: #{tpu_custom_call.1} parent=1 // pred_region
      %s115 = ssub.s32 2048, 2048
      %116 = vsyncadd [#allocation4], %s115
      %s117 = sshll.u32 [#allocation7], 4
      %s118 = int_to_ptr.vmem [resolvable:$true] %s117
      %123 = dma.vmem_to_hbm [thread:$0]  %s118, 2048, %s2, [#allocation4], 512, 512, 32
    $region21: #{tpu_custom_call.1} parent=1 // pred_fallthru
      _
    // Predicated region
    $region22: #{tpu_custom_call.1} parent=1 // pred_check
      _
    $region23: #{tpu_custom_call.1} parent=1 // pred_check_branch
      %125 = sbr.rel (0) target = $region25
    $region24: #{tpu_custom_call.1} parent=1 // pred_region
      %126 = dma.done [#allocation4], 2048
    $region25: #{tpu_custom_call.1} parent=1 // pred_fallthru
      _
    %127 = vsyncpa [#allocation3], 1
    %128 = vsyncpa [#allocation6], 1
    %129 = vsyncpa [#allocation4], 1

</llo_original>
